<compile_context>
chip_gen: v7x
topology: tpu7x:2x2x1
jax: 0.10.0
libtpu: 0.0.40
codegen_flags: <defaults>
</compile_context>

<pallas_src>
import jax
import jax.numpy as jnp
from jax import lax
from jax.experimental import pallas as pl
from jax.experimental.pallas import tpu as pltpu

# ------------------------------ module params ------------------------------ #
CIN, COUT, K, STRIDE, PAD = 3, 16, 2, 2, 1          # ConvTranspose2d
POOL_K, POOL_PAD, POOL_STRIDE = 3, 2, 1             # MaxPool2d
H = W = 16                                          # spatial input size

DR = K * H                      # full (uncropped) deconv rows           = 32
DLANES = K * W * COUT           # packed (w_out, c) lane dim             = 512
XCOLS = K * W * CIN             # block-diag contraction dim (kh,iw,ci)  = 96

ROW_LO, ROW_HI = PAD, K * H - 1 - PAD               # valid deconv rows [1, 30]
LANE_LO, LANE_HI = PAD * COUT, (K * W - PAD) * COUT  # valid packed lanes [16,496)

HO = (K * H - 2 * PAD) + 2 * POOL_PAD - POOL_K + 1  # 32
WO = (K * W - 2 * PAD) + 2 * POOL_PAD - POOL_K + 1  # 32


# ------------------------------ fused kernel ------------------------------- #

def _fused_kernel(x_ref, w_ref, b_ref, o_ref):
    """x_ref: (1, DR, XCOLS)  interleaved per-output-row input (kh-block layout)
       w_ref: (XCOLS, DLANES) block-diagonal deconv weights
       b_ref: (1, DLANES)     bias tiled across w_out positions
       o_ref: (1, DR, DLANES) pooled output, packed (h, w*c) lane-dense layout
    """
    xb = x_ref[0]                                                  # (32, 96)
    # Transposed conv: one matmul already yields the full 32x(32*16) deconv grid
    # with rows interleaved (2*ih+kh) and lanes packed as (2*iw+kw, cout).
    acc = jnp.dot(xb, w_ref[...], preferred_element_type=jnp.float32)
    act = jnp.maximum(acc + b_ref[...], 0.0)                       # ReLU

    # Crop (ConvTranspose padding=1): zero the cropped border rows / columns.
    rows = lax.broadcasted_iota(jnp.int32, act.shape, 0)
    cols = lax.broadcasted_iota(jnp.int32, act.shape, 1)
    valid = ((rows >= ROW_LO) & (rows <= ROW_HI)
             & (cols >= LANE_LO) & (cols < LANE_HI))
    m = jnp.where(valid, act, 0.0)                                 # (32, 512)

    # Separable 3x3 / stride-1 max pool with pad=2. Borders are zero, values are
    # >= 0, so circular rolls == zero-fill shifts and the +/- pair is symmetric.
    hm = jnp.maximum(m, jnp.maximum(pltpu.roll(m, 1, 0),
                                    pltpu.roll(m, DR - 1, 0)))      # H direction
    out = jnp.maximum(hm, jnp.maximum(pltpu.roll(hm, COUT, 1),
                                      pltpu.roll(hm, DLANES - COUT, 1)))  # W dir
    o_ref[0] = out


# --------------------------------- wrapper --------------------------------- #

@jax.jit
def model_forward(x_nchw, weight, bias):
    """x_nchw: (N, 3, 16, 16); weight: (CIN, COUT, K, K) torch ConvTranspose2d
    layout; bias: (COUT,). Returns (N, COUT, 32, 32) in NCHW."""
    N = x_nchw.shape[0]

    # Tiny input prep (12 KB): rows interleaved by output row p = 2*ih + kh,
    # with x[ih, :, :] placed in the kh-th 48-wide block.
    x_nhwc = jnp.transpose(x_nchw, (0, 2, 3, 1)).astype(jnp.float32)   # (N,H,W,CIN)
    xr = x_nhwc.reshape(N, H, W * CIN)                                  # (N,16,48)
    z = jnp.zeros_like(xr)
    xbig = jnp.stack([jnp.concatenate([xr, z], axis=-1),
                      jnp.concatenate([z, xr], axis=-1)],
                     axis=2).reshape(N, DR, XCOLS)                      # (N,32,96)

    # Block-diagonal weight: W[kh*48 + iw*3 + ci, iw*32 + kw*16 + c] = w[ci,c,kh,kw]
    w_t = jnp.transpose(weight.astype(jnp.float32), (2, 0, 3, 1))       # (KH,CIN,KW,COUT)
    eye = jnp.eye(W, dtype=jnp.float32)
    wb = eye[None, :, None, :, None, None] * w_t[:, None, :, None, :, :]
    wblock = wb.reshape(XCOLS, DLANES)                                  # (96, 512)
    bias_p = jnp.tile(bias.astype(jnp.float32), K * W).reshape(1, DLANES)

    out = pl.pallas_call(
        _fused_kernel,
        out_shape=jax.ShapeDtypeStruct((N, DR, DLANES), jnp.float32),
        grid=(N,),
        in_specs=[pl.BlockSpec((1, DR, XCOLS), lambda n: (n, 0, 0)),
                  pl.BlockSpec((XCOLS, DLANES), lambda n: (0, 0)),
                  pl.BlockSpec((1, DLANES), lambda n: (0, 0))],
        out_specs=pl.BlockSpec((1, DR, DLANES), lambda n: (n, 0, 0)),
        compiler_params=pltpu.CompilerParams(
            dimension_semantics=("parallel",)),
    )(xbig, wblock, bias_p)

    # Single XLA pass to reach the module's NCHW output format.
    return out.reshape(N, HO, WO, COUT).transpose(0, 3, 1, 2)


# ----------------------------- pure-JAX reference --------------------------- #

def _reference(x_nchw, weight, bias):
    w_conv = jnp.flip(weight, (2, 3)).transpose(1, 0, 2, 3)  # (COUT, CIN, K, K)
    y = lax.conv_general_dilated(
        x_nchw, w_conv, window_strides=(1, 1),
        padding=[(K - 1 - PAD, K - 1 - PAD)] * 2,
        lhs_dilation=(STRIDE, STRIDE),
        dimension_numbers=("NCHW", "OIHW", "NCHW"))
    y = jnp.maximum(y + bias.reshape(1, COUT, 1, 1), 0.0)
    return lax.reduce_window(
        y, -jnp.inf, lax.max,
        window_dimensions=(1, 1, POOL_K, POOL_K),
        window_strides=(1, 1, POOL_STRIDE, POOL_STRIDE),
        padding=((0, 0), (0, 0), (POOL_PAD, POOL_PAD), (POOL_PAD, POOL_PAD)))


# ----------------------------------- main ----------------------------------- #

if __name__ == "__main__":
    key = jax.random.PRNGKey(0)
    kx, kw, kb = jax.random.split(key, 3)

    x = jax.random.normal(kx, (1, CIN, 16, 16), dtype=jnp.float32)
    weight = jax.random.normal(kw, (CIN, COUT, K, K), dtype=jnp.float32) * 0.2
    bias = jax.random.normal(kb, (COUT,), dtype=jnp.float32) * 0.1

    out = jax.block_until_ready(model_forward(x, weight, bias))
    ref = jax.block_until_ready(_reference(x, weight, bias))

    assert out.shape == (1, COUT, 32, 32), out.shape
    assert jnp.allclose(out, ref, atol=1e-3, rtol=1e-3), "mismatch vs reference"

    print("KERNEL_OK")
</pallas_src>

<mosaic_0001>
module attributes {stable_mosaic.version = 11 : i64} {
  func.func @_fused_kernel(%arg0: i32, %arg1: memref<1x32x96xf32, #tpu.memory_space<vmem>>, %arg2: memref<96x512xf32, #tpu.memory_space<vmem>>, %arg3: memref<1x512xf32, #tpu.memory_space<vmem>>, %arg4: memref<1x32x512xf32, #tpu.memory_space<vmem>>) attributes {dimension_semantics = [#tpu.dimension_semantics<parallel>], iteration_bounds = array<i64: 1>, scalar_prefetch = 0 : i64, scratch_operands = 0 : i64, tpu.core_type = #tpu.core_type<tc>, window_params = [{transform_indices = @transform_0, window_bounds = array<i64: 1, 32, 96>}, {pipeline_mode = #tpu.pipeline_mode<synchronous>, transform_indices = @transform_1, window_bounds = array<i64: 96, 512>}, {pipeline_mode = #tpu.pipeline_mode<synchronous>, transform_indices = @transform_2, window_bounds = array<i64: 1, 512>}, {transform_indices = @transform_3, window_bounds = array<i64: 1, 32, 512>}]} {
    %c0 = arith.constant 0 : index
    %c0_0 = arith.constant 0 : index
    %c0_1 = arith.constant 0 : index
    %0 = vector.load %arg1[%c0, %c0_0, %c0_1] : memref<1x32x96xf32, #tpu.memory_space<vmem>>, vector<1x32x96xf32>
    %1 = vector.shape_cast %0 : vector<1x32x96xf32> to vector<32x96xf32>
    %c0_2 = arith.constant 0 : index
    %c0_3 = arith.constant 0 : index
    %2 = vector.load %arg2[%c0_2, %c0_3] : memref<96x512xf32, #tpu.memory_space<vmem>>, vector<96x512xf32>
    %cst = arith.constant dense<0.000000e+00> : vector<32x512xf32>
    %3 = tpu.matmul %1, %2, %cst {dimension_numbers = #tpu.dot_dimension_numbers<[1], [0], [0], [1], [0, 0, 1, 1], [], []>} : vector<32x96xf32>, vector<96x512xf32>, vector<32x512xf32> -> vector<32x512xf32>
    %c0_4 = arith.constant 0 : index
    %c0_5 = arith.constant 0 : index
    %4 = vector.load %arg3[%c0_4, %c0_5] : memref<1x512xf32, #tpu.memory_space<vmem>>, vector<1x512xf32>
    %5 = vector.broadcast %4 : vector<1x512xf32> to vector<32x512xf32>
    %6 = arith.addf %3, %5 : vector<32x512xf32>
    %cst_6 = arith.constant 0.000000e+00 : f32
    %7 = vector.broadcast %cst_6 : f32 to vector<32x512xf32>
    %8 = arith.maximumf %6, %7 : vector<32x512xf32>
    %9 = tpu.iota {dimensions = array<i32: 0>} : vector<32x512xi32>
    %10 = tpu.iota {dimensions = array<i32: 1>} : vector<32x512xi32>
    %c1_i32 = arith.constant 1 : i32
    %11 = vector.broadcast %c1_i32 : i32 to vector<32x512xi32>
    %12 = arith.cmpi sge, %9, %11 : vector<32x512xi32>
    %c30_i32 = arith.constant 30 : i32
    %13 = vector.broadcast %c30_i32 : i32 to vector<32x512xi32>
    %14 = arith.cmpi sle, %9, %13 : vector<32x512xi32>
    %15 = arith.andi %12, %14 : vector<32x512xi1>
    %c16_i32 = arith.constant 16 : i32
    %16 = vector.broadcast %c16_i32 : i32 to vector<32x512xi32>
    %17 = arith.cmpi sge, %10, %16 : vector<32x512xi32>
    %18 = arith.andi %15, %17 : vector<32x512xi1>
    %c496_i32 = arith.constant 496 : i32
    %19 = vector.broadcast %c496_i32 : i32 to vector<32x512xi32>
    %20 = arith.cmpi slt, %10, %19 : vector<32x512xi32>
    %21 = arith.andi %18, %20 : vector<32x512xi1>
    %cst_7 = arith.constant 0.000000e+00 : f32
    %22 = vector.broadcast %cst_7 : f32 to vector<32x512xf32>
    %23 = arith.select %21, %8, %22 : vector<32x512xi1>, vector<32x512xf32>
    %c1_i32_8 = arith.constant 1 : i32
    %24 = tpu.dynamic_rotate %23 by %c1_i32_8 dim 0 : vector<32x512xf32>, i32 -> vector<32x512xf32>
    %c31_i32 = arith.constant 31 : i32
    %25 = tpu.dynamic_rotate %23 by %c31_i32 dim 0 : vector<32x512xf32>, i32 -> vector<32x512xf32>
    %26 = arith.maximumf %24, %25 : vector<32x512xf32>
    %27 = arith.maximumf %23, %26 : vector<32x512xf32>
    %c16_i32_9 = arith.constant 16 : i32
    %28 = tpu.dynamic_rotate %27 by %c16_i32_9 dim 1 : vector<32x512xf32>, i32 -> vector<32x512xf32>
    %c496_i32_10 = arith.constant 496 : i32
    %29 = tpu.dynamic_rotate %27 by %c496_i32_10 dim 1 : vector<32x512xf32>, i32 -> vector<32x512xf32>
    %30 = arith.maximumf %28, %29 : vector<32x512xf32>
    %31 = arith.maximumf %27, %30 : vector<32x512xf32>
    %c0_11 = arith.constant 0 : index
    %c0_12 = arith.constant 0 : index
    %c0_13 = arith.constant 0 : index
    %32 = vector.load %arg4[%c0_11, %c0_12, %c0_13] : memref<1x32x512xf32, #tpu.memory_space<vmem>>, vector<1x32x512xf32>
    %33 = vector.shape_cast %32 : vector<1x32x512xf32> to vector<32x512xf32>
    %34 = vector.shape_cast %31 : vector<32x512xf32> to vector<1x32x512xf32>
    tpu.vector_store %arg4[%c0_11, %c0_12, %c0_13], %34 {strides = array<i32>} : memref<1x32x512xf32, #tpu.memory_space<vmem>>, vector<1x32x512xf32>,
    return
  }
  func.func @transform_0(%arg0: i32) -> (i32, i32, i32) {
    %c0_i32 = arith.constant 0 : i32
    %c0_i32_0 = arith.constant 0 : i32
    %c0_i32_1 = arith.constant 0 : i32
    return %arg0, %c0_i32, %c0_i32_0 : i32, i32, i32
  }
  func.func @transform_1(%arg0: i32) -> (i32, i32) {
    %c0_i32 = arith.constant 0 : i32
    %c0_i32_0 = arith.constant 0 : i32
    %c0_i32_1 = arith.constant 0 : i32
    return %c0_i32, %c0_i32_0 : i32, i32
  }
  func.func @transform_2(%arg0: i32) -> (i32, i32) {
    %c0_i32 = arith.constant 0 : i32
    %c0_i32_0 = arith.constant 0 : i32
    %c0_i32_1 = arith.constant 0 : i32
    return %c0_i32, %c0_i32_0 : i32, i32
  }
  func.func @transform_3(%arg0: i32) -> (i32, i32, i32) {
    %c0_i32 = arith.constant 0 : i32
    %c0_i32_0 = arith.constant 0 : i32
    %c0_i32_1 = arith.constant 0 : i32
    return %arg0, %c0_i32, %c0_i32_0 : i32, i32, i32
  }
}

</mosaic_0001>

<llo_original>
// kernel: tile.8
$region0: #{tile.8}
  #allocation0 [shape = 's32[1]{0}', space=sflag, size = 0x4, scoped, tag = 'scoped memory for tile.8']
  %s0 = inlined_call_operand.vmem [shape: f32[16], index: 0, kind: input, shape index: {}]
  %s1 = inlined_call_operand.vmem [shape: f32[32,16], index: 1, kind: output, shape index: {}]
  // Predicated region
  $region2: #{tile.8} parent=0 // pred_check
    _
  $region3: #{tile.8} parent=0 // pred_check_branch
    %3 = sbr.rel (0) target = $region5
  $region4: #{tile.8} parent=0 // pred_region
    _
  $region5: #{tile.8} parent=0 // pred_fallthru
    _
  %v4 = vld [vmem:[%s0] ss:$0 sm:$0xff]
  %5 = vst [vmem:[%s1] sm:$0xff] %v4
  %s6 = scalar_lea.vmem %s1, 8
  %7 = vst [vmem:[%s6] sm:$0xff] %v4
  %s8 = scalar_lea.vmem %s1, 16
  %9 = vst [vmem:[%s8] sm:$0xff] %v4
  %s10 = scalar_lea.vmem %s1, 24
  %11 = vst [vmem:[%s10] sm:$0xff] %v4

// kernel: tile.9
$region0: #{tile.9}
  %s0 = inlined_call_operand.vmem [shape: f32[32,16], index: 0, kind: input, shape index: {}]
  %s1 = inlined_call_operand.vmem [shape: f32[1,512], index: 1, kind: output, shape index: {}]
  $region1: #{tile.9} parent=0
    #allocation0 [shape = 'u8[16384]{0}', space=vmem, size = 0x4000, scoped, tag = 'scoped mem for output reshape']
    %v2 = vld [vmem:[%s0] ss:$8 sm:$0xf]
    %vm3 = vcmask 130048
    %4 = vst.msk [vmem:[#allocation0] ss:$8 sm:$0xf] %vm3, %v2
    %s5 = scalar_lea.vmem %s0, 7
    %v6 = vld [vmem:[%s5] ss:$8 sm:$0xf]
    %7 = vrot.lane.b32.xlu0 %v6, 112
    %v8 = vpop.permute.xlu0 %7
    %vm9 = vcmask 1048448
    %10 = vst.msk [vmem:[#allocation0] ss:$8 sm:$0xf] %vm9, %v8
    %s11 = scalar_lea.vmem %s0, 6
    %v12 = vld [vmem:[%s11] ss:$8 sm:$0xf]
    %13 = vrot.lane.b32.xlu0 %v12, 96
    %v14 = vpop.permute.xlu0 %13
    %vm15 = vcmask 917248
    %16 = vst.msk [vmem:[#allocation0] ss:$8 sm:$0xf] %vm15, %v14
    %s17 = scalar_lea.vmem %s0, 5
    %v18 = vld [vmem:[%s17] ss:$8 sm:$0xf]
    %19 = vrot.lane.b32.xlu0 %v18, 80
    %v20 = vpop.permute.xlu0 %19
    %vm21 = vcmask 786048
    %22 = vst.msk [vmem:[#allocation0] ss:$8 sm:$0xf] %vm21, %v20
    %s23 = scalar_lea.vmem %s0, 4
    %v24 = vld [vmem:[%s23] ss:$8 sm:$0xf]
    %25 = vrot.lane.b32.xlu0 %v24, 64
    %v26 = vpop.permute.xlu0 %25
    %vm27 = vcmask 654848
    %28 = vst.msk [vmem:[#allocation0] ss:$8 sm:$0xf] %vm27, %v26
    %s29 = scalar_lea.vmem %s0, 3
    %v30 = vld [vmem:[%s29] ss:$8 sm:$0xf]
    %31 = vrot.lane.b32.xlu0 %v30, 48
    %v32 = vpop.permute.xlu0 %31
    %vm33 = vcmask 523648
    %34 = vst.msk [vmem:[#allocation0] ss:$8 sm:$0xf] %vm33, %v32
    %s35 = scalar_lea.vmem %s0, 2
    %v36 = vld [vmem:[%s35] ss:$8 sm:$0xf]
    %37 = vrot.lane.b32.xlu0 %v36, 32
    %v38 = vpop.permute.xlu0 %37
    %vm39 = vcmask 392448
    %40 = vst.msk [vmem:[#allocation0] ss:$8 sm:$0xf] %vm39, %v38
    %s41 = scalar_lea.vmem %s0, 1
    %v42 = vld [vmem:[%s41] ss:$8 sm:$0xf]
    %43 = vrot.lane.b32.xlu0 %v42, 16
    %v44 = vpop.permute.xlu0 %43
    %vm45 = vcmask 261248
    %46 = vst.msk [vmem:[#allocation0] ss:$8 sm:$0xf] %vm45, %v44
    %s48 = sshllo.u32 0, 1
    %v50 = vld [vmem:[#allocation0] sm:%s48]
    %s51 = sshllo.u32 0, 1
    %52 = vst [vmem:[%s1] sm:%s51] %v50
    %s53 = scalar_lea.vmem [#allocation0], 8
    %v54 = vld [vmem:[%s53] sm:%s48]
    %s55 = sshllo.u32 0, 1
    %s56 = scalar_lea.vmem %s1, 1
    %57 = vst [vmem:[%s56] sm:%s55] %v54
    %s58 = scalar_lea.vmem [#allocation0], 16
    %v59 = vld [vmem:[%s58] sm:%s48]
    %s60 = sshllo.u32 0, 1
    %s61 = smul.addr 1, 2
    %s62 = scalar_lea.vmem %s1, %s61
    %63 = vst [vmem:[%s62] sm:%s60] %v59
    %s64 = scalar_lea.vmem [#allocation0], 24
    %v65 = vld [vmem:[%s64] sm:%s48]
    %s66 = sshllo.u32 0, 1
    %s67 = smul.addr 1, 3
    %s68 = scalar_lea.vmem %s1, %s67
    %69 = vst [vmem:[%s68] sm:%s66] %v65

// kernel: model_forward.1
$region0: #{model_forward.1}
  #allocation0 [shape = 'u32[]', space=smem, size = 0x4, offset = 0x4, fixed_abs, tag = 'smem constant byte address 0x4 - core index']
  #allocation1 [shape = 'u32[144,128]{1,0:T(1,128)}', space=vmem, size = 0x12000, scoped, tag = 'internal scratch']
  %s0 = inlined_call_operand.vmem [shape: f32[1,32,96], index: 0, kind: input, shape index: {}]
  %s1 = inlined_call_operand.vmem [shape: f32[96,512], index: 1, kind: input, shape index: {}]
  %s2 = inlined_call_operand.vmem [shape: f32[1,512], index: 2, kind: input, shape index: {}]
  %s3 = inlined_call_operand.vmem [shape: f32[1,32,512], index: 3, kind: output, shape index: {}]
  %s4 = sld [smem:[#allocation0]]
  $region22: #{model_forward.1} parent=0
    _
  %s6 = ssub.s32 1, %s4
  %s7 = scalar_select 0, %s6, %s4
  // Predicated region
  $region2: #{model_forward.1} parent=0 // pred_check
    _
  $region3: #{model_forward.1} parent=0 // pred_check_branch
    %9 = sbr.rel (0) target = $region5
  $region4: #{model_forward.1} parent=0 // pred_region
    _
  $region5: #{model_forward.1} parent=0 // pred_fallthru
    _
  // Predicated region
  $region6: #{model_forward.1} parent=0 // pred_check
    _
  $region7: #{model_forward.1} parent=0 // pred_check_branch
    %11 = sbr.rel (0) target = $region9
  $region8: #{model_forward.1} parent=0 // pred_region
    _
  $region9: #{model_forward.1} parent=0 // pred_fallthru
    _
  // Predicated region
  $region10: #{model_forward.1} parent=0 // pred_check
    _
  $region11: #{model_forward.1} parent=0 // pred_check_branch
    %13 = sbr.rel (0) target = $region13
  $region12: #{model_forward.1} parent=0 // pred_region
    _
  $region13: #{model_forward.1} parent=0 // pred_fallthru
    _
  %v14 = vld [vmem:[%s0] sm:$0xff]
  %v15 = vld [vmem:[%s0 + $0x8] sm:$0xff]
  %v16 = vld [vmem:[%s0 + $0x10] sm:$0xff]
  %v17 = vld [vmem:[%s0 + $0x18] sm:$0xff]
  %v18 = vld [vmem:[%s1] sm:$0xff]
  %v19 = vld [vmem:[%s1 + $0x8] sm:$0xff]
  %v20 = vld [vmem:[%s1 + $0x10] sm:$0xff]
  %v21 = vld [vmem:[%s1 + $0x18] sm:$0xff]
  %v22 = vld [vmem:[%s1 + $0x20] sm:$0xff]
  %v23 = vld [vmem:[%s1 + $0x28] sm:$0xff]
  %v24 = vld [vmem:[%s1 + $0x30] sm:$0xff]
  %v25 = vld [vmem:[%s1 + $0x38] sm:$0xff]
  %v26 = vld [vmem:[%s1 + $0x40] sm:$0xff]
  %v27 = vld [vmem:[%s1 + $0x48] sm:$0xff]
  %v28 = vld [vmem:[%s1 + $0x50] sm:$0xff]
  %v29 = vld [vmem:[%s1 + $0x58] sm:$0xff]
  %v30 = vld [vmem:[%s1 + $0x60] sm:$0xff]
  %v31 = vld [vmem:[%s1 + $0x68] sm:$0xff]
  %v32 = vld [vmem:[%s1 + $0x70] sm:$0xff]
  %v33 = vld [vmem:[%s1 + $0x78] sm:$0xff]
  %v34 = vld [vmem:[%s1 + $0x80] sm:$0xff]
  %v35 = vld [vmem:[%s1 + $0x88] sm:$0xff]
  %v36 = vld [vmem:[%s1 + $0x90] sm:$0xff]
  %v37 = vld [vmem:[%s1 + $0x98] sm:$0xff]
  %v38 = vld [vmem:[%s1 + $0xa0] sm:$0xff]
  %v39 = vld [vmem:[%s1 + $0xa8] sm:$0xff]
  %v40 = vld [vmem:[%s1 + $0xb0] sm:$0xff]
  %v41 = vld [vmem:[%s1 + $0xb8] sm:$0xff]
  %v42 = vld [vmem:[%s1 + $0xc0] sm:$0xff]
  %v43 = vld [vmem:[%s1 + $0xc8] sm:$0xff]
  %v44 = vld [vmem:[%s1 + $0xd0] sm:$0xff]
  %v45 = vld [vmem:[%s1 + $0xd8] sm:$0xff]
  %v46 = vld [vmem:[%s1 + $0xe0] sm:$0xff]
  %v47 = vld [vmem:[%s1 + $0xe8] sm:$0xff]
  %v48 = vld [vmem:[%s1 + $0xf0] sm:$0xff]
  %v49 = vld [vmem:[%s1 + $0xf8] sm:$0xff]
  %v50 = vld [vmem:[%s1 + $0x100] sm:$0xff]
  %v51 = vld [vmem:[%s1 + $0x108] sm:$0xff]
  %v52 = vld [vmem:[%s1 + $0x110] sm:$0xff]
  %v53 = vld [vmem:[%s1 + $0x118] sm:$0xff]
  %v54 = vld [vmem:[%s1 + $0x120] sm:$0xff]
  %v55 = vld [vmem:[%s1 + $0x128] sm:$0xff]
  %v56 = vld [vmem:[%s1 + $0x130] sm:$0xff]
  %v57 = vld [vmem:[%s1 + $0x138] sm:$0xff]
  %v58 = vld [vmem:[%s1 + $0x140] sm:$0xff]
  %v59 = vld [vmem:[%s1 + $0x148] sm:$0xff]
  %v60 = vld [vmem:[%s1 + $0x150] sm:$0xff]
  %v61 = vld [vmem:[%s1 + $0x158] sm:$0xff]
  %v62 = vld [vmem:[%s1 + $0x160] sm:$0xff]
  %v63 = vld [vmem:[%s1 + $0x168] sm:$0xff]
  %v64 = vld [vmem:[%s1 + $0x170] sm:$0xff]
  %v65 = vld [vmem:[%s1 + $0x178] sm:$0xff]
  %v66 = vld [vmem:[%s2] sm:$0xf]
  %v68 = vlaneseq
  %v69 = vshrl.u32 %v68, 7
  %v70 = vsub.s32 0, %v69
  %v71 = vrot.slane %v66, %v70
  %v72 = vlaneseq
  %v73 = vshrl.u32 %v72, 7
  %v74 = vsub.s32 1, %v73
  %v75 = vrot.slane %v66, %v74
  %v76 = vlaneseq
  %v77 = vshrl.u32 %v76, 7
  %v78 = vsub.s32 2, %v77
  %v79 = vrot.slane %v66, %v78
  %v80 = vlaneseq
  %v81 = vshrl.u32 %v80, 7
  %v82 = vsub.s32 3, %v81
  %v83 = vrot.slane %v66, %v82
  %vm88 = vcmask 785408
  %v90 = vsel %vm88, %v14, 0
  %v93 = vsel %vm88, %v15, 0
  %v96 = vsel %vm88, %v16, 0
  %v99 = vsel %vm88, %v17, 0
  %101 = vmatprep.subr.mxu0 %v19
  %102 = vmatpush1.msra.mxu0 %v18
  %103 = vmatprep.subr.mxu0 %v23
  %104 = vmatpush1.msra.mxu0 %v22
  %105 = vmatprep.subr.mxu0 %v27
  %106 = vmatpush1.msra.mxu0 %v26
  %107 = vmatprep.subr.mxu0 %v31
  %108 = vmatpush1.msra.mxu0 %v30
  %109 = vmatprep.subr.mxu0 %v35
  %110 = vmatpush1.msra.mxu0 %v34
  %111 = vmatprep.subr.mxu0 %v39
  %112 = vmatpush1.msra.mxu0 %v38
  %113 = vmatprep.subr.mxu0 %v43
  %114 = vmatpush1.msra.mxu0 %v42
  %115 = vmatprep.subr.mxu0 %v47
  %116 = vmatpush1.msra.mxu0 %v46
  %117 = vmatprep.subr.mxu0 %v51
  %118 = vmatpush1.msra.mxu0 %v50
  %119 = vmatprep.subr.mxu0 %v55
  %120 = vmatpush1.msra.mxu0 %v54
  %121 = vmatprep.subr.mxu0 %v59
  %122 = vmatpush1.msra.mxu0 %v58
  %123 = vmatprep.subr.mxu0 %v63
  %124 = vmatpush1.msra.mxu0 %v62
  %125 = vmatprep.subr.mxu0 0.0
  %126 = vmatpush1.msra.mxu0 0.0
  %127 = vmatprep.subr.mxu0 0.0
  %128 = vmatpush1.msra.mxu0 0.0
  %129 = vmatprep.subr.mxu0 0.0
  %130 = vmatpush1.msra.mxu0 0.0
  %131 = vmatprep.subr.mxu0 0.0
  %132 = vmatpush1.msra.mxu0 0.0
  %133 = vmatprep.subr.mxu0 0.0
  %134 = vmatpush1.msra.mxu0 0.0
  %135 = vmatprep.subr.mxu0 0.0
  %136 = vmatpush1.msra.mxu0 0.0
  %137 = vmatprep.subr.mxu0 0.0
  %138 = vmatpush1.msra.mxu0 0.0
  %139 = vmatprep.subr.mxu0 0.0
  %140 = vmatpush1.msra.mxu0 0.0
  %141 = vmatprep.subr.mxu0 0.0
  %142 = vmatpush1.msra.mxu0 0.0
  %143 = vmatprep.subr.mxu0 0.0
  %144 = vmatpush1.msra.mxu0 0.0
  %145 = vmatprep.subr.mxu0 0.0
  %146 = vmatpush1.msra.mxu0 0.0
  %147 = vmatprep.subr.mxu0 0.0
  %148 = vmatpush1.msra.mxu0 0.0
  %149 = vmatprep.subr.mxu0 0.0
  %150 = vmatpush1.msra.mxu0 0.0
  %151 = vmatprep.subr.mxu0 0.0
  %152 = vmatpush1.msra.mxu0 0.0
  %153 = vmatprep.subr.mxu0 0.0
  %154 = vmatpush1.msra.mxu0 0.0
  %155 = vmatprep.subr.mxu0 0.0
  %156 = vmatpush1.msra.mxu0 0.0
  %157 = vmatprep.subr.mxu0 0.0
  %158 = vmatpush1.msra.mxu0 0.0
  %159 = vmatprep.subr.mxu0 0.0
  %160 = vmatpush1.msra.mxu0 0.0
  %161 = vmatprep.subr.mxu0 0.0
  %162 = vmatpush1.msra.mxu0 0.0
  %163 = vmatprep.subr.mxu0 0.0
  %164 = vmatpush1.msra.mxu0 0.0
  %165 = vmatprep.mubr.f32.mxu0 0.0
  %166 = vmatmul.mubr.f32.gmra.mrb[0].mxu0 %v90
  %v167 = vpop.f32.mrb[0].mxu0
  %v168 = vadd.f32 %v71, %v167
  %v169 = vpop.f32.mrb[0].mxu0
  %v170 = vadd.f32 %v75, %v169
  %171 = vmatprep.mubr.f32.mxu0 0.0
  %172 = vmatmul.mubr.f32.gmra.mrb[0].mxu0 %v93
  %v173 = vpop.f32.mrb[0].mxu0
  %v174 = vadd.f32 %v71, %v173
  %v175 = vpop.f32.mrb[0].mxu0
  %v176 = vadd.f32 %v75, %v175
  %177 = vmatprep.mubr.f32.mxu0 0.0
  %178 = vmatmul.mubr.f32.gmra.mrb[0].mxu0 %v96
  %v179 = vpop.f32.mrb[0].mxu0
  %v180 = vadd.f32 %v71, %v179
  %v181 = vpop.f32.mrb[0].mxu0
  %v182 = vadd.f32 %v75, %v181
  %183 = vmatprep.mubr.f32.mxu0 0.0
  %184 = vmatmul.mubr.f32.gmra.mrb[0].mxu0 %v99
  %v185 = vpop.f32.mrb[0].mxu0
  %v186 = vadd.f32 %v71, %v185
  %v187 = vpop.f32.mrb[0].mxu0
  %v188 = vadd.f32 %v75, %v187
  %189 = vdwg.mxu0
  %190 = vmatprep.subr.mxu0 %v21
  %191 = vmatpush1.msra.mxu0 %v20
  %192 = vmatprep.subr.mxu0 %v25
  %193 = vmatpush1.msra.mxu0 %v24
  %194 = vmatprep.subr.mxu0 %v29
  %195 = vmatpush1.msra.mxu0 %v28
  %196 = vmatprep.subr.mxu0 %v33
  %197 = vmatpush1.msra.mxu0 %v32
  %198 = vmatprep.subr.mxu0 %v37
  %199 = vmatpush1.msra.mxu0 %v36
  %200 = vmatprep.subr.mxu0 %v41
  %201 = vmatpush1.msra.mxu0 %v40
  %202 = vmatprep.subr.mxu0 %v45
  %203 = vmatpush1.msra.mxu0 %v44
  %204 = vmatprep.subr.mxu0 %v49
  %205 = vmatpush1.msra.mxu0 %v48
  %206 = vmatprep.subr.mxu0 %v53
  %207 = vmatpush1.msra.mxu0 %v52
  %208 = vmatprep.subr.mxu0 %v57
  %209 = vmatpush1.msra.mxu0 %v56
  %210 = vmatprep.subr.mxu0 %v61
  %211 = vmatpush1.msra.mxu0 %v60
  %212 = vmatprep.subr.mxu0 %v65
  %213 = vmatpush1.msra.mxu0 %v64
  %214 = vmatprep.subr.mxu0 0.0
  %215 = vmatpush1.msra.mxu0 0.0
  %216 = vmatprep.subr.mxu0 0.0
  %217 = vmatpush1.msra.mxu0 0.0
  %218 = vmatprep.subr.mxu0 0.0
  %219 = vmatpush1.msra.mxu0 0.0
  %220 = vmatprep.subr.mxu0 0.0
  %221 = vmatpush1.msra.mxu0 0.0
  %222 = vmatprep.subr.mxu0 0.0
  %223 = vmatpush1.msra.mxu0 0.0
  %224 = vmatprep.subr.mxu0 0.0
  %225 = vmatpush1.msra.mxu0 0.0
  %226 = vmatprep.subr.mxu0 0.0
  %227 = vmatpush1.msra.mxu0 0.0
  %228 = vmatprep.subr.mxu0 0.0
  %229 = vmatpush1.msra.mxu0 0.0
  %230 = vmatprep.subr.mxu0 0.0
  %231 = vmatpush1.msra.mxu0 0.0
  %232 = vmatprep.subr.mxu0 0.0
  %233 = vmatpush1.msra.mxu0 0.0
  %234 = vmatprep.subr.mxu0 0.0
  %235 = vmatpush1.msra.mxu0 0.0
  %236 = vmatprep.subr.mxu0 0.0
  %237 = vmatpush1.msra.mxu0 0.0
  %238 = vmatprep.subr.mxu0 0.0
  %239 = vmatpush1.msra.mxu0 0.0
  %240 = vmatprep.subr.mxu0 0.0
  %241 = vmatpush1.msra.mxu0 0.0
  %242 = vmatprep.subr.mxu0 0.0
  %243 = vmatpush1.msra.mxu0 0.0
  %244 = vmatprep.subr.mxu0 0.0
  %245 = vmatpush1.msra.mxu0 0.0
  %246 = vmatprep.subr.mxu0 0.0
  %247 = vmatpush1.msra.mxu0 0.0
  %248 = vmatprep.subr.mxu0 0.0
  %249 = vmatpush1.msra.mxu0 0.0
  %250 = vmatprep.subr.mxu0 0.0
  %251 = vmatpush1.msra.mxu0 0.0
  %252 = vmatprep.subr.mxu0 0.0
  %253 = vmatpush1.msra.mxu0 0.0
  %254 = vmatprep.mubr.f32.mxu0 0.0
  %255 = vmatmul.mubr.f32.gmra.mrb[0].mxu0 %v90
  %v256 = vpop.f32.mrb[0].mxu0
  %v257 = vadd.f32 %v79, %v256
  %v258 = vpop.f32.mrb[0].mxu0
  %v259 = vadd.f32 %v83, %v258
  %260 = vmatprep.mubr.f32.mxu0 0.0
  %261 = vmatmul.mubr.f32.gmra.mrb[0].mxu0 %v93
  %v262 = vpop.f32.mrb[0].mxu0
  %v263 = vadd.f32 %v79, %v262
  %v264 = vpop.f32.mrb[0].mxu0
  %v265 = vadd.f32 %v83, %v264
  %266 = vmatprep.mubr.f32.mxu0 0.0
  %267 = vmatmul.mubr.f32.gmra.mrb[0].mxu0 %v96
  %v268 = vpop.f32.mrb[0].mxu0
  %v269 = vadd.f32 %v79, %v268
  %v270 = vpop.f32.mrb[0].mxu0
  %v271 = vadd.f32 %v83, %v270
  %272 = vmatprep.mubr.f32.mxu0 0.0
  %273 = vmatmul.mubr.f32.gmra.mrb[0].mxu0 %v99
  %v274 = vpop.f32.mrb[0].mxu0
  %v275 = vadd.f32 %v79, %v274
  %v276 = vpop.f32.mrb[0].mxu0
  %v277 = vadd.f32 %v83, %v276
  %278 = vdwg.mxu0
  %v279 = vmax.f32 %v168, 0.0
  %v280 = vmax.f32 %v170, 0.0
  %v281 = vmax.f32 %v257, 0.0
  %v282 = vmax.f32 %v259, 0.0
  %v283 = vmax.f32 %v174, 0.0
  %v284 = vmax.f32 %v176, 0.0
  %v285 = vmax.f32 %v263, 0.0
  %v286 = vmax.f32 %v265, 0.0
  %v287 = vmax.f32 %v180, 0.0
  %v288 = vmax.f32 %v182, 0.0
  %v289 = vmax.f32 %v269, 0.0
  %v290 = vmax.f32 %v271, 0.0
  %v291 = vmax.f32 %v186, 0.0
  %v292 = vmax.f32 %v188, 0.0
  %v293 = vmax.f32 %v275, 0.0
  %v294 = vmax.f32 %v277, 0.0
  %v295 = vlaneseq
  %v296 = vshrl.u32 %v295, 7
  %v297 = vadd.s32 %v296, 8
  %v298 = vadd.s32 %v296, 16
  %v299 = vadd.s32 %v296, 24
  %v300 = vlaneseq
  %v301 = vand.u32 %v300, 127
  %v302 = vadd.s32 %v301, 128
  %v303 = vadd.s32 %v301, 256
  %v304 = vadd.s32 %v301, 384
  %vm305 = vcmp.ge.s32.totalorder %v296, 1
  %vm306 = vcmp.ge.s32.totalorder %v297, 1
  %vm307 = vcmp.ge.s32.totalorder %v298, 1
  %vm308 = vcmp.ge.s32.totalorder %v299, 1
  %vm309 = vcmp.le.s32.totalorder %v296, 30
  %vm310 = vcmp.le.s32.totalorder %v297, 30
  %vm311 = vcmp.le.s32.totalorder %v298, 30
  %vm312 = vcmp.le.s32.totalorder %v299, 30
  %vm313 = vmand %vm305, %vm309
  %vm314 = vmand %vm306, %vm310
  %vm315 = vmand %vm307, %vm311
  %vm316 = vmand %vm308, %vm312
  %vm317 = vcmp.ge.s32.totalorder %v301, 16
  %vm318 = vcmp.ge.s32.totalorder %v302, 16
  %vm319 = vcmp.ge.s32.totalorder %v303, 16
  %vm320 = vcmp.ge.s32.totalorder %v304, 16
  %vm321 = vmand %vm313, %vm317
  %vm322 = vmand %vm313, %vm318
  %vm323 = vmand %vm313, %vm319
  %vm324 = vmand %vm313, %vm320
  %vm325 = vmand %vm314, %vm317
  %vm326 = vmand %vm314, %vm318
  %vm327 = vmand %vm314, %vm319
  %vm328 = vmand %vm314, %vm320
  %vm329 = vmand %vm315, %vm317
  %vm330 = vmand %vm315, %vm318
  %vm331 = vmand %vm315, %vm319
  %vm332 = vmand %vm315, %vm320
  %vm333 = vmand %vm316, %vm317
  %vm334 = vmand %vm316, %vm318
  %vm335 = vmand %vm316, %vm319
  %vm336 = vmand %vm316, %vm320
  %vm337 = vcmp.lt.s32.totalorder %v301, 496
  %vm338 = vcmp.lt.s32.totalorder %v302, 496
  %vm339 = vcmp.lt.s32.totalorder %v303, 496
  %vm340 = vcmp.lt.s32.totalorder %v304, 496
  %vm341 = vmand %vm321, %vm337
  %vm342 = vmand %vm322, %vm338
  %vm343 = vmand %vm323, %vm339
  %vm344 = vmand %vm324, %vm340
  %vm345 = vmand %vm325, %vm337
  %vm346 = vmand %vm326, %vm338
  %vm347 = vmand %vm327, %vm339
  %vm348 = vmand %vm328, %vm340
  %vm349 = vmand %vm329, %vm337
  %vm350 = vmand %vm330, %vm338
  %vm351 = vmand %vm331, %vm339
  %vm352 = vmand %vm332, %vm340
  %vm353 = vmand %vm333, %vm337
  %vm354 = vmand %vm334, %vm338
  %vm355 = vmand %vm335, %vm339
  %vm356 = vmand %vm336, %vm340
  %v357 = vsel %vm341, %v279, 0.0
  %v358 = vsel %vm342, %v280, 0.0
  %v359 = vsel %vm343, %v281, 0.0
  %v360 = vsel %vm344, %v282, 0.0
  %v361 = vsel %vm345, %v283, 0.0
  %v362 = vsel %vm346, %v284, 0.0
  %v363 = vsel %vm347, %v285, 0.0
  %v364 = vsel %vm348, %v286, 0.0
  %v365 = vsel %vm349, %v287, 0.0
  %v366 = vsel %vm350, %v288, 0.0
  %v367 = vsel %vm351, %v289, 0.0
  %v368 = vsel %vm352, %v290, 0.0
  %v369 = vsel %vm353, %v291, 0.0
  %v370 = vsel %vm354, %v292, 0.0
  %v371 = vsel %vm355, %v293, 0.0
  %v372 = vsel %vm356, %v294, 0.0
  %v373 = vrot.slane %v357, 7
  %v374 = vrot.slane %v358, 7
  %v375 = vrot.slane %v359, 7
  %v376 = vrot.slane %v360, 7
  %v377 = vrot.slane %v361, 7
  %v378 = vrot.slane %v362, 7
  %v379 = vrot.slane %v363, 7
  %v380 = vrot.slane %v364, 7
  %v381 = vrot.slane %v365, 7
  %v382 = vrot.slane %v366, 7
  %v383 = vrot.slane %v367, 7
  %v384 = vrot.slane %v368, 7
  %v385 = vrot.slane %v369, 7
  %v386 = vrot.slane %v370, 7
  %v387 = vrot.slane %v371, 7
  %v388 = vrot.slane %v372, 7
  %vm389 = vcmp.lt.s32.totalorder %v296, 1
  %v390 = vsel %vm389, %v381, %v385
  %v391 = vsel %vm389, %v382, %v386
  %v392 = vsel %vm389, %v383, %v387
  %v393 = vsel %vm389, %v384, %v388
  %v394 = vsel %vm389, %v377, %v381
  %v395 = vsel %vm389, %v378, %v382
  %v396 = vsel %vm389, %v379, %v383
  %v397 = vsel %vm389, %v380, %v384
  %v398 = vsel %vm389, %v373, %v377
  %v399 = vsel %vm389, %v374, %v378
  %v400 = vsel %vm389, %v375, %v379
  %v401 = vsel %vm389, %v376, %v380
  %v402 = vsel %vm389, %v385, %v373
  %v403 = vsel %vm389, %v386, %v374
  %v404 = vsel %vm389, %v387, %v375
  %v405 = vsel %vm389, %v388, %v376
  %v406 = vrot.slane %v357, 1
  %v407 = vrot.slane %v358, 1
  %v408 = vrot.slane %v359, 1
  %v409 = vrot.slane %v360, 1
  %v410 = vrot.slane %v361, 1
  %v411 = vrot.slane %v362, 1
  %v412 = vrot.slane %v363, 1
  %v413 = vrot.slane %v364, 1
  %v414 = vrot.slane %v365, 1
  %v415 = vrot.slane %v366, 1
  %v416 = vrot.slane %v367, 1
  %v417 = vrot.slane %v368, 1
  %v418 = vrot.slane %v369, 1
  %v419 = vrot.slane %v370, 1
  %v420 = vrot.slane %v371, 1
  %v421 = vrot.slane %v372, 1
  %vm422 = vcmp.lt.s32.totalorder %v296, 7
  %v423 = vsel %vm422, %v414, %v418
  %v424 = vsel %vm422, %v415, %v419
  %v425 = vsel %vm422, %v416, %v420
  %v426 = vsel %vm422, %v417, %v421
  %v427 = vsel %vm422, %v410, %v414
  %v428 = vsel %vm422, %v411, %v415
  %v429 = vsel %vm422, %v412, %v416
  %v430 = vsel %vm422, %v413, %v417
  %v431 = vsel %vm422, %v406, %v410
  %v432 = vsel %vm422, %v407, %v411
  %v433 = vsel %vm422, %v408, %v412
  %v434 = vsel %vm422, %v409, %v413
  %v435 = vsel %vm422, %v418, %v406
  %v436 = vsel %vm422, %v419, %v407
  %v437 = vsel %vm422, %v420, %v408
  %v438 = vsel %vm422, %v421, %v409
  %v439 = vmax.f32 %v402, %v431
  %v440 = vmax.f32 %v403, %v432
  %v441 = vmax.f32 %v404, %v433
  %v442 = vmax.f32 %v405, %v434
  %v443 = vmax.f32 %v398, %v427
  %v444 = vmax.f32 %v399, %v428
  %v445 = vmax.f32 %v400, %v429
  %v446 = vmax.f32 %v401, %v430
  %v447 = vmax.f32 %v394, %v423
  %v448 = vmax.f32 %v395, %v424
  %v449 = vmax.f32 %v396, %v425
  %v450 = vmax.f32 %v397, %v426
  %v451 = vmax.f32 %v390, %v435
  %v452 = vmax.f32 %v391, %v436
  %v453 = vmax.f32 %v392, %v437
  %v454 = vmax.f32 %v393, %v438
  %v455 = vmax.f32 %v357, %v439
  %v456 = vmax.f32 %v358, %v440
  %v457 = vmax.f32 %v359, %v441
  %v458 = vmax.f32 %v360, %v442
  %v459 = vmax.f32 %v361, %v443
  %v460 = vmax.f32 %v362, %v444
  %v461 = vmax.f32 %v363, %v445
  %v462 = vmax.f32 %v364, %v446
  %v463 = vmax.f32 %v365, %v447
  %v464 = vmax.f32 %v366, %v448
  %v465 = vmax.f32 %v367, %v449
  %v466 = vmax.f32 %v368, %v450
  %v467 = vmax.f32 %v369, %v451
  %v468 = vmax.f32 %v370, %v452
  %v469 = vmax.f32 %v371, %v453
  %v470 = vmax.f32 %v372, %v454
  %471 = vrot.lane.b32.xlu0 %v455, 16
  %v472 = vpop.permute.xlu0 %471
  %473 = vrot.lane.b32.xlu0 %v459, 16
  %v474 = vpop.permute.xlu0 %473
  %475 = vrot.lane.b32.xlu0 %v463, 16
  %v476 = vpop.permute.xlu0 %475
  %477 = vrot.lane.b32.xlu0 %v467, 16
  %v478 = vpop.permute.xlu0 %477
  %479 = vrot.lane.b32.xlu0 %v456, 16
  %v480 = vpop.permute.xlu0 %479
  %481 = vrot.lane.b32.xlu0 %v460, 16
  %v482 = vpop.permute.xlu0 %481
  %483 = vrot.lane.b32.xlu0 %v464, 16
  %v484 = vpop.permute.xlu0 %483
  %485 = vrot.lane.b32.xlu0 %v468, 16
  %v486 = vpop.permute.xlu0 %485
  %487 = vrot.lane.b32.xlu0 %v457, 16
  %v488 = vpop.permute.xlu0 %487
  %489 = vrot.lane.b32.xlu0 %v461, 16
  %v490 = vpop.permute.xlu0 %489
  %491 = vrot.lane.b32.xlu0 %v465, 16
  %v492 = vpop.permute.xlu0 %491
  %493 = vrot.lane.b32.xlu0 %v469, 16
  %v494 = vpop.permute.xlu0 %493
  %495 = vrot.lane.b32.xlu0 %v458, 16
  %v496 = vpop.permute.xlu0 %495
  %497 = vrot.lane.b32.xlu0 %v462, 16
  %v498 = vpop.permute.xlu0 %497
  %499 = vrot.lane.b32.xlu0 %v466, 16
  %v500 = vpop.permute.xlu0 %499
  %501 = vrot.lane.b32.xlu0 %v470, 16
  %v502 = vpop.permute.xlu0 %501
  %vm503 = vcmp.lt.s32.totalorder %v301, 16
  %v504 = vsel %vm503, %v488, %v496
  %v505 = vsel %vm503, %v490, %v498
  %v506 = vsel %vm503, %v492, %v500
  %v507 = vsel %vm503, %v494, %v502
  %v508 = vsel %vm503, %v480, %v488
  %v509 = vsel %vm503, %v482, %v490
  %v510 = vsel %vm503, %v484, %v492
  %v511 = vsel %vm503, %v486, %v494
  %v512 = vsel %vm503, %v472, %v480
  %v513 = vsel %vm503, %v474, %v482
  %v514 = vsel %vm503, %v476, %v484
  %v515 = vsel %vm503, %v478, %v486
  %v516 = vsel %vm503, %v496, %v472
  %v517 = vsel %vm503, %v498, %v474
  %v518 = vsel %vm503, %v500, %v476
  %v519 = vsel %vm503, %v502, %v478
  %520 = vrot.lane.b32.xlu0 %v455, 112
  %v521 = vpop.permute.xlu0 %520
  %522 = vrot.lane.b32.xlu0 %v459, 112
  %v523 = vpop.permute.xlu0 %522
  %524 = vrot.lane.b32.xlu0 %v463, 112
  %v525 = vpop.permute.xlu0 %524
  %526 = vrot.lane.b32.xlu0 %v467, 112
  %v527 = vpop.permute.xlu0 %526
  %528 = vrot.lane.b32.xlu0 %v456, 112
  %v529 = vpop.permute.xlu0 %528
  %530 = vrot.lane.b32.xlu0 %v460, 112
  %v531 = vpop.permute.xlu0 %530
  %532 = vrot.lane.b32.xlu0 %v464, 112
  %v533 = vpop.permute.xlu0 %532
  %534 = vrot.lane.b32.xlu0 %v468, 112
  %v535 = vpop.permute.xlu0 %534
  %536 = vrot.lane.b32.xlu0 %v457, 112
  %v537 = vpop.permute.xlu0 %536
  %538 = vrot.lane.b32.xlu0 %v461, 112
  %v539 = vpop.permute.xlu0 %538
  %540 = vrot.lane.b32.xlu0 %v465, 112
  %v541 = vpop.permute.xlu0 %540
  %542 = vrot.lane.b32.xlu0 %v469, 112
  %v543 = vpop.permute.xlu0 %542
  %544 = vrot.lane.b32.xlu0 %v458, 112
  %v545 = vpop.permute.xlu0 %544
  %546 = vrot.lane.b32.xlu0 %v462, 112
  %v547 = vpop.permute.xlu0 %546
  %548 = vrot.lane.b32.xlu0 %v466, 112
  %v549 = vpop.permute.xlu0 %548
  %550 = vrot.lane.b32.xlu0 %v470, 112
  %v551 = vpop.permute.xlu0 %550
  %vm552 = vcmp.lt.s32.totalorder %v301, 112
  %v553 = vsel %vm552, %v537, %v545
  %v554 = vsel %vm552, %v539, %v547
  %v555 = vsel %vm552, %v541, %v549
  %v556 = vsel %vm552, %v543, %v551
  %v557 = vsel %vm552, %v529, %v537
  %v558 = vsel %vm552, %v531, %v539
  %v559 = vsel %vm552, %v533, %v541
  %v560 = vsel %vm552, %v535, %v543
  %v561 = vsel %vm552, %v521, %v529
  %v562 = vsel %vm552, %v523, %v531
  %v563 = vsel %vm552, %v525, %v533
  %v564 = vsel %vm552, %v527, %v535
  %v565 = vsel %vm552, %v545, %v521
  %v566 = vsel %vm552, %v547, %v523
  %v567 = vsel %vm552, %v549, %v525
  %v568 = vsel %vm552, %v551, %v527
  %v569 = vmax.f32 %v516, %v561
  %v570 = vmax.f32 %v512, %v557
  %v571 = vmax.f32 %v508, %v553
  %v572 = vmax.f32 %v504, %v565
  %v573 = vmax.f32 %v517, %v562
  %v574 = vmax.f32 %v513, %v558
  %v575 = vmax.f32 %v509, %v554
  %v576 = vmax.f32 %v505, %v566
  %v577 = vmax.f32 %v518, %v563
  %v578 = vmax.f32 %v514, %v559
  %v579 = vmax.f32 %v510, %v555
  %v580 = vmax.f32 %v506, %v567
  %v581 = vmax.f32 %v519, %v564
  %v582 = vmax.f32 %v515, %v560
  %v583 = vmax.f32 %v511, %v556
  %v584 = vmax.f32 %v507, %v568
  %v585 = vmax.f32 %v455, %v569
  %v586 = vmax.f32 %v456, %v570
  %v587 = vmax.f32 %v457, %v571
  %v588 = vmax.f32 %v458, %v572
  %v589 = vmax.f32 %v459, %v573
  %v590 = vmax.f32 %v460, %v574
  %v591 = vmax.f32 %v461, %v575
  %v592 = vmax.f32 %v462, %v576
  %v593 = vmax.f32 %v463, %v577
  %v594 = vmax.f32 %v464, %v578
  %v595 = vmax.f32 %v465, %v579
  %v596 = vmax.f32 %v466, %v580
  %v597 = vmax.f32 %v467, %v581
  %v598 = vmax.f32 %v468, %v582
  %v599 = vmax.f32 %v469, %v583
  %v600 = vmax.f32 %v470, %v584
  %601 = vst [vmem:[%s3] sm:$0xff] %v585
  %602 = vst [vmem:[%s3 + $0x8] sm:$0xff] %v586
  %603 = vst [vmem:[%s3 + $0x10] sm:$0xff] %v587
  %604 = vst [vmem:[%s3 + $0x18] sm:$0xff] %v588
  %605 = vst [vmem:[%s3 + $0x20] sm:$0xff] %v589
  %606 = vst [vmem:[%s3 + $0x28] sm:$0xff] %v590
  %607 = vst [vmem:[%s3 + $0x30] sm:$0xff] %v591
  %608 = vst [vmem:[%s3 + $0x38] sm:$0xff] %v592
  %609 = vst [vmem:[%s3 + $0x40] sm:$0xff] %v593
  %610 = vst [vmem:[%s3 + $0x48] sm:$0xff] %v594
  %611 = vst [vmem:[%s3 + $0x50] sm:$0xff] %v595
  %612 = vst [vmem:[%s3 + $0x58] sm:$0xff] %v596
  %613 = vst [vmem:[%s3 + $0x60] sm:$0xff] %v597
  %614 = vst [vmem:[%s3 + $0x68] sm:$0xff] %v598
  %615 = vst [vmem:[%s3 + $0x70] sm:$0xff] %v599
  %616 = vst [vmem:[%s3 + $0x78] sm:$0xff] %v600
  // Predicated region
  $region14: #{model_forward.1} parent=0 // pred_check
    _
  $region15: #{model_forward.1} parent=0 // pred_check_branch
    %618 = sbr.rel (0) target = $region17
  $region16: #{model_forward.1} parent=0 // pred_region
    _
  $region17: #{model_forward.1} parent=0 // pred_fallthru
    _
  // Predicated region
  $region18: #{model_forward.1} parent=0 // pred_check
    _
  $region19: #{model_forward.1} parent=0 // pred_check_branch
    %620 = sbr.rel (0) target = $region21
  $region20: #{model_forward.1} parent=0 // pred_region
    _
  $region21: #{model_forward.1} parent=0 // pred_fallthru
    _

</llo_original>
